<compile_context>
chip_gen: v7x
topology: tpu7x:2x2x1
jax: 0.10.0
libtpu: 0.0.40
codegen_flags: <defaults>
</compile_context>

<pallas_src>
import jax
import jax.numpy as jnp
from jax.experimental import pallas as pl
from jax.experimental.pallas import tpu as pltpu


def _mish_kernel(x_ref, o_ref):
    x = x_ref[...]
    xf = x.astype(jnp.float32)
    # One-exp algebraic Mish:
    #   tanh(softplus(x)) = ((1+e^x)^2 - 1) / ((1+e^x)^2 + 1) = n / (n + 2),
    #   with n = e^x * (e^x + 2).
    # Clamp the exp argument: for x >= 20 the result equals x to f32 precision,
    # and the clamp keeps e^x finite (also protects garbage reads in the
    # partial last block; those writes are masked anyway).
    ex = jnp.exp(jnp.minimum(xf, 20.0))
    n = ex * (ex + 2.0)
    t = n / (n + 2.0)  # exact divide: approx rcp would blow f32 1e-5 tolerance
    o_ref[...] = (xf * t).astype(o_ref.dtype)


def _num_tensorcores() -> int:
    """Best-effort TensorCores-per-chip query; defaults to 1 (safe)."""
    try:
        info = pltpu.get_tpu_info()
        for attr in ("tensorcores_per_chip", "num_tensorcores", "num_cores",
                     "cores_per_chip"):
            v = getattr(info, attr, None)
            if isinstance(v, int) and v > 0:
                return v
    except Exception:
        pass
    try:
        kind = getattr(jax.devices()[0], "device_kind", "") or ""
        if "v7" in kind.lower():
            return 2
    except Exception:
        pass
    return 1


def _choose_tiling(total: int, itemsize: int):
    """Pick (cols, rows, tile_rows, needs_pad) for the flattened 2D view."""
    # dtype-aware packed sublane tile: 8 rows f32, 16 bf16, 32 int8/fp8.
    sub = 8 * max(1, 4 // itemsize)

    # Widest lane-dense last dim that divides the flat length exactly
    # (fast path: zero extra HBM copies). Otherwise pad to a multiple of 128.
    cols = None
    for c in (1024, 512, 256, 128):
        if total % c == 0:
            cols = c
            break
    needs_pad = cols is None
    if needs_pad:
        cols = 128
    rows = pl.cdiv(total, cols)

    # Block sized by the f32 compute footprint (~4 MiB per block); with
    # double-buffered in+out that is ~16 MiB, under the explicit 32 MiB limit.
    target_elems = (4 * 1024 * 1024) // 4
    tile_rows = max(sub, min(target_elems // cols, rows))
    tile_rows = max(sub, (tile_rows // sub) * sub)

    # Only multi-TC chips (v7x) benefit from more grid steps on the "parallel"
    # axis; single-TC chips keep the full block (serial grid => pure overhead).
    num_tc = _num_tensorcores()
    if num_tc > 1:
        min_block_rows = max(sub, (512 * 1024) // (cols * 4))
        while (pl.cdiv(rows, tile_rows) < 2 * num_tc
               and tile_rows // 2 >= min_block_rows):
            tile_rows = max(sub, ((tile_rows // 2) // sub) * sub)

    if rows <= tile_rows:
        tile_rows = rows  # single full-extent block (valid even if < sub)

    return cols, rows, tile_rows, needs_pad


def mish(x):
    """Elementwise Mish via a Pallas TPU kernel. Accepts any shape/dtype."""
    orig_shape = x.shape
    orig_dtype = x.dtype
    total = x.size
    if total == 0:
        return x
    itemsize = jnp.dtype(orig_dtype).itemsize

    cols, rows, tile_rows, needs_pad = _choose_tiling(total, itemsize)
    padded_total = rows * cols

    x_flat = jnp.ravel(x)
    if needs_pad:
        # Only when the flat length isn't a multiple of 128 (< 128 elements).
        x_flat = jnp.pad(x_flat, (0, padded_total - total))
    x2d = x_flat.reshape(rows, cols)

    grid = (pl.cdiv(rows, tile_rows),)  # partial last block handled by Pallas

    cost = pl.CostEstimate(
        flops=6 * padded_total,
        transcendentals=2 * padded_total,      # exp + divide reciprocal
        bytes_accessed=2 * padded_total * itemsize,
    )

    out2d = pl.pallas_call(
        _mish_kernel,
        out_shape=jax.ShapeDtypeStruct((rows, cols), orig_dtype),
        grid_spec=pltpu.PrefetchScalarGridSpec(
            num_scalar_prefetch=0,
            grid=grid,
            in_specs=[pl.BlockSpec((tile_rows, cols), lambda i: (i, 0))],
            out_specs=pl.BlockSpec((tile_rows, cols), lambda i: (i, 0)),
        ),
        compiler_params=pltpu.CompilerParams(
            dimension_semantics=("parallel",),
            vmem_limit_bytes=32 * 1024 * 1024,
        ),
        cost_estimate=cost,
    )(x2d)

    out_flat = out2d.reshape(-1)
    if needs_pad:
        out_flat = out_flat[:total]
    return out_flat.reshape(orig_shape)


if __name__ == "__main__":
    key = jax.random.PRNGKey(0)
    x = jax.random.normal(key, (2, 4, 16, 16), dtype=jnp.float32)

    y = mish(x)
    jax.block_until_ready(y)

    # Reference: numerically-stable softplus + tanh (PyTorch semantics).
    sp_ref = jnp.maximum(x, 0.0) + jnp.log1p(jnp.exp(-jnp.abs(x)))
    y_ref = x * jnp.tanh(sp_ref)

    assert y.shape == x.shape and y.dtype == x.dtype
    assert jnp.allclose(y, y_ref, atol=1e-5, rtol=1e-5)

    print("KERNEL_OK")
</pallas_src>

<mosaic_0001>
module attributes {stable_mosaic.version = 11 : i64} {
  func.func @_mish_kernel(%arg0: i32, %arg1: memref<2x1024xf32, #tpu.memory_space<vmem>>, %arg2: memref<2x1024xf32, #tpu.memory_space<vmem>>) attributes {dimension_semantics = [#tpu.dimension_semantics<parallel>], iteration_bounds = array<i64: 1>, scalar_prefetch = 0 : i64, scratch_operands = 0 : i64, tpu.core_type = #tpu.core_type<tc>, window_params = [{transform_indices = @transform_0, window_bounds = array<i64: 2, 1024>}, {transform_indices = @transform_1, window_bounds = array<i64: 2, 1024>}]} {
    %c0 = arith.constant 0 : index
    %c0_0 = arith.constant 0 : index
    %0 = vector.load %arg1[%c0, %c0_0] : memref<2x1024xf32, #tpu.memory_space<vmem>>, vector<2x1024xf32>
    %cst = arith.constant 2.000000e+01 : f32
    %1 = vector.broadcast %cst : f32 to vector<2x1024xf32>
    %2 = arith.minimumf %0, %1 : vector<2x1024xf32>
    %3 = math.exp %2 : vector<2x1024xf32>
    %cst_1 = arith.constant 2.000000e+00 : f32
    %4 = vector.broadcast %cst_1 : f32 to vector<2x1024xf32>
    %5 = arith.addf %3, %4 : vector<2x1024xf32>
    %6 = arith.mulf %3, %5 : vector<2x1024xf32>
    %cst_2 = arith.constant 2.000000e+00 : f32
    %7 = vector.broadcast %cst_2 : f32 to vector<2x1024xf32>
    %8 = arith.addf %6, %7 : vector<2x1024xf32>
    %9 = arith.divf %6, %8 : vector<2x1024xf32>
    %10 = arith.mulf %0, %9 : vector<2x1024xf32>
    %c0_3 = arith.constant 0 : index
    %c0_4 = arith.constant 0 : index
    %11 = vector.load %arg2[%c0_3, %c0_4] : memref<2x1024xf32, #tpu.memory_space<vmem>>, vector<2x1024xf32>
    tpu.vector_store %arg2[%c0_3, %c0_4], %10 {strides = array<i32>} : memref<2x1024xf32, #tpu.memory_space<vmem>>, vector<2x1024xf32>,
    return
  }
  func.func @transform_0(%arg0: i32) -> (i32, i32) {
    %c0_i32 = arith.constant 0 : i32
    %c0_i32_0 = arith.constant 0 : i32
    return %arg0, %c0_i32 : i32, i32
  }
  func.func @transform_1(%arg0: i32) -> (i32, i32) {
    %c0_i32 = arith.constant 0 : i32
    %c0_i32_0 = arith.constant 0 : i32
    return %arg0, %c0_i32 : i32, i32
  }
}

</mosaic_0001>

<llo_original>
// kernel: tpu_custom_call.1
$region0: #{tpu_custom_call.1}
  #allocation0 [shape = 'u32[]', space=smem, size = 0x4, offset = 0x4, fixed_abs, tag = 'smem constant byte address 0x4 - core index']
  #allocation1 [shape = 'u32[144,128]{1,0:T(1,128)}', space=vmem, size = 0x12000, scoped, tag = 'internal scratch']
  %s0 = inlined_call_operand.hbm [shape: f32[2,1024], index: 0, kind: input, shape index: {}]
  %s1 = inlined_call_operand.hbm [shape: f32[2,1024], index: 1, kind: output, shape index: {}]
  %s2 = sld [smem:[#allocation0]]
  $region18: #{tpu_custom_call.1} parent=0
    _
  %s4 = ssub.s32 1, %s2
  %s5 = scalar_select 0, %s4, %s2
  $region1: #{tpu_custom_call.1} parent=0
    #allocation2 [shape = 'u8[8192]{0}', space=vmem, size = 0x2000, scoped, tag = 'input window, operand 0, single buffered']
    #allocation3 [shape = 's32[1]{0}', space=sflag, size = 0x4, scoped, tag = 'scoped memory for tpu_custom_call.1']
    #allocation4 [shape = 's32[1]{0}', space=sflag, size = 0x4, scoped, tag = 'scoped memory for tpu_custom_call.1']
    #allocation5 [shape = 'u8[8192]{0}', space=vmem, size = 0x2000, scoped, tag = 'output window, operand 0, single buffered']
    %6 = vsyncpa [#allocation3], 0
    %7 = vsyncpa [#allocation4], 0
    // Predicated region
    $region2: #{tpu_custom_call.1} parent=1 // pred_check
      _
    $region3: #{tpu_custom_call.1} parent=1 // pred_check_branch
      %9 = sbr.rel (0) target = $region5
    $region4: #{tpu_custom_call.1} parent=1 // pred_region
      %s11 = ssub.s32 256, 256
      %12 = vsyncadd [#allocation3], %s11
      %s14 = sshll.u32 [#allocation2], 4
      %s15 = int_to_ptr.vmem [resolvable:$true] %s14
      %17 = dma.hbm_to_vmem [thread:$0]  %s0, 256, %s15, [#allocation3]
    $region5: #{tpu_custom_call.1} parent=1 // pred_fallthru
      _
    // Predicated region
    $region6: #{tpu_custom_call.1} parent=1 // pred_check
      _
    $region7: #{tpu_custom_call.1} parent=1 // pred_check_branch
      %19 = sbr.rel (0) target = $region9
    $region8: #{tpu_custom_call.1} parent=1 // pred_region
      %20 = dma.done [#allocation3], 256
    $region9: #{tpu_custom_call.1} parent=1 // pred_fallthru
      _
    %v21 = vld [vmem:[#allocation2] sm:$0xff]
    %v22 = vld [vmem:[#allocation2 + $0x8] sm:$0xff]
    %v23 = vmin.f32 %v21, 20.0
    %v24 = vmin.f32 %v22, 20.0
    %v25 = vmul.f32 %v23, 1.442695
    %v26 = vpow.pop %v25
    %v27 = vmul.f32 %v24, 1.442695
    %v28 = vpow.pop %v27
    %v29 = vadd.f32 %v26, 2.0
    %v30 = vadd.f32 %v28, 2.0
    %v31 = vmul.f32 %v26, %v29
    %v32 = vmul.f32 %v28, %v30
    %v33 = vadd.f32 %v31, 2.0
    %v34 = vadd.f32 %v32, 2.0
    %v35 = vrcp.pop %v33
    %v36 = vmul.f32 %v31, %v35
    %v37 = vrcp.pop %v34
    %v38 = vmul.f32 %v32, %v37
    %v39 = vmul.f32 %v21, %v36
    %v40 = vmul.f32 %v22, %v38
    %41 = vst [vmem:[#allocation5] sm:$0xff] %v39
    %42 = vst [vmem:[#allocation5 + $0x8] sm:$0xff] %v40
    // Predicated region
    $region10: #{tpu_custom_call.1} parent=1 // pred_check
      _
    $region11: #{tpu_custom_call.1} parent=1 // pred_check_branch
      %44 = sbr.rel (0) target = $region13
    $region12: #{tpu_custom_call.1} parent=1 // pred_region
      %s46 = ssub.s32 256, 256
      %47 = vsyncadd [#allocation4], %s46
      %s49 = sshll.u32 [#allocation5], 4
      %s50 = int_to_ptr.vmem [resolvable:$true] %s49
      %52 = dma.vmem_to_hbm [thread:$0]  %s50, 256, %s1, [#allocation4]
    $region13: #{tpu_custom_call.1} parent=1 // pred_fallthru
      _
    // Predicated region
    $region14: #{tpu_custom_call.1} parent=1 // pred_check
      _
    $region15: #{tpu_custom_call.1} parent=1 // pred_check_branch
      %54 = sbr.rel (0) target = $region17
    $region16: #{tpu_custom_call.1} parent=1 // pred_region
      %55 = dma.done [#allocation4], 256
    $region17: #{tpu_custom_call.1} parent=1 // pred_fallthru
      _
    %56 = vsyncpa [#allocation3], 1
    %57 = vsyncpa [#allocation4], 1

</llo_original>
